<compile_context>
chip_gen: v5e
topology: v5e:2x2
jax: 0.10.0
libtpu: 0.0.40
codegen_flags: <defaults>
</compile_context>

<pallas_src>
import functools

import jax
import jax.numpy as jnp
from jax.experimental import pallas as pl
from jax.experimental.pallas import tpu as pltpu

NEG_SLOPE = 0.01          # nn.LeakyReLU(negative_slope=0.01)
IN_EPS = 1e-5             # nn.InstanceNorm2d default eps


def _round_up(x, m):
    return ((x + m - 1) // m) * m


# --------------------------- conv-as-matmul kernel ---------------------------

def _conv_mm_kernel(p_ref, w_ref, b_ref, o_ref, *, apply_lrelu):
    # p_ref: (TM, Kp) bf16   w_ref: (Kp, Cp) bf16 (VMEM-resident across grid)
    # b_ref: (1, Cp) f32     o_ref: (TM, Cp) f32
    acc = jnp.dot(p_ref[...], w_ref[...], preferred_element_type=jnp.float32)
    y = acc + b_ref[...]
    if apply_lrelu:
        y = jnp.where(y > 0, y, NEG_SLOPE * y)
    o_ref[...] = y.astype(o_ref.dtype)


def _conv_matmul(patches, w_mat, bias, *, apply_lrelu, tm):
    Mp, Kp = patches.shape
    _, Cp = w_mat.shape
    kernel = functools.partial(_conv_mm_kernel, apply_lrelu=apply_lrelu)
    flops = 2 * Mp * Kp * Cp
    bytes_accessed = (patches.size * 2 + w_mat.size * 2
                      + bias.size * 4 + Mp * Cp * 4)
    return pl.pallas_call(
        kernel,
        out_shape=jax.ShapeDtypeStruct((Mp, Cp), jnp.float32),
        grid=(Mp // tm,),
        in_specs=[
            pl.BlockSpec((tm, Kp), lambda i: (i, 0)),
            pl.BlockSpec((Kp, Cp), lambda i: (0, 0)),   # weight never re-DMA'd
            pl.BlockSpec((1, Cp), lambda i: (0, 0)),
        ],
        out_specs=pl.BlockSpec((tm, Cp), lambda i: (i, 0)),
        compiler_params=pltpu.CompilerParams(
            dimension_semantics=("parallel",)),
        cost_estimate=pl.CostEstimate(
            flops=flops, transcendentals=0, bytes_accessed=bytes_accessed),
    )(patches, w_mat, bias)


# --------------------- InstanceNorm2d(affine) + LeakyReLU --------------------

def _in_lrelu_kernel(x_ref, g_ref, b_ref, o_ref):
    x = x_ref[...]                                    # (1, OHW, Cp) f32
    mean = jnp.mean(x, axis=1, keepdims=True)
    var = jnp.mean(jnp.square(x - mean), axis=1, keepdims=True)
    y = (x - mean) * jax.lax.rsqrt(var + IN_EPS)
    y = y * g_ref[...] + b_ref[...]
    o_ref[...] = jnp.where(y > 0, y, NEG_SLOPE * y).astype(o_ref.dtype)


def _instance_norm_lrelu(x, gamma, beta):
    # x: (N, OHW, Cp) f32; gamma/beta: (1, 1, Cp) f32
    N, OHW, Cp = x.shape
    return pl.pallas_call(
        _in_lrelu_kernel,
        out_shape=jax.ShapeDtypeStruct((N, OHW, Cp), jnp.float32),
        grid=(N,),
        in_specs=[
            pl.BlockSpec((1, OHW, Cp), lambda n: (n, 0, 0)),
            pl.BlockSpec((1, 1, Cp), lambda n: (0, 0, 0)),
            pl.BlockSpec((1, 1, Cp), lambda n: (0, 0, 0)),
        ],
        out_specs=pl.BlockSpec((1, OHW, Cp), lambda n: (n, 0, 0)),
        compiler_params=pltpu.CompilerParams(
            dimension_semantics=("parallel",)),
    )(x, gamma, beta)


# ------------------------------- module forward ------------------------------

def conv_in_relu(x, w, b, gamma=None, beta=None, *, stride=2, padding=2,
                 isn=False, compute_dtype=jnp.bfloat16):
    """Pallas forward of ConvINRelu.

    x: (N, C_in, H, W) f32 NCHW, w: (C_out, C_in, KH, KW), b: (C_out,)
    gamma/beta: (C_out,) used only when isn=True.  Returns (N, C_out, OH, OW) f32.
    """
    N, Cin, H, W = x.shape
    Cout, Cin_w, KH, KW = w.shape
    assert Cin == Cin_w
    OH = (H + 2 * padding - KH) // stride + 1
    OW = (W + 2 * padding - KW) // stride + 1

    # ---- im2col (wrapper-side layout plumbing, stays in XLA) ----
    x_nhwc = jnp.transpose(x, (0, 2, 3, 1))
    x_pad = jnp.pad(x_nhwc, ((0, 0), (padding, padding), (padding, padding), (0, 0)))
    cols = []
    for kh in range(KH):
        for kw in range(KW):
            cols.append(x_pad[:, kh:kh + (OH - 1) * stride + 1:stride,
                                 kw:kw + (OW - 1) * stride + 1:stride, :])
    K = KH * KW * Cin
    M = N * OH * OW
    patches = jnp.concatenate(cols, axis=-1).reshape(M, K)   # feature order [kh, kw, cin]

    # ---- pad to MXU/lane-friendly shapes, cast to bf16 for the MXU ----
    Kp = _round_up(K, 128)
    Cp = _round_up(Cout, 128)
    tm = min(512, _round_up(M, 8))
    Mp = _round_up(M, tm)

    patches_p = jnp.zeros((Mp, Kp), compute_dtype).at[:M, :K].set(
        patches.astype(compute_dtype))
    w_mat = jnp.transpose(w, (2, 3, 1, 0)).reshape(K, Cout)   # matches patch ordering
    w_p = jnp.zeros((Kp, Cp), compute_dtype).at[:K, :Cout].set(
        w_mat.astype(compute_dtype))
    b_p = jnp.zeros((1, Cp), jnp.float32).at[0, :Cout].set(b.astype(jnp.float32))

    # ---- fused matmul + bias (+ LeakyReLU when no InstanceNorm follows) ----
    y = _conv_matmul(patches_p, w_p, b_p, apply_lrelu=not isn, tm=tm)   # (Mp, Cp) f32

    if isn:
        g_p = jnp.ones((1, 1, Cp), jnp.float32).at[0, 0, :Cout].set(
            gamma.astype(jnp.float32))
        bt_p = jnp.zeros((1, 1, Cp), jnp.float32).at[0, 0, :Cout].set(
            beta.astype(jnp.float32))
        y = _instance_norm_lrelu(y[:M].reshape(N, OH * OW, Cp), g_p, bt_p)
        y = y.reshape(M, Cp)

    out = y[:M, :Cout].reshape(N, OH, OW, Cout)
    return jnp.transpose(out, (0, 3, 1, 2))                   # back to NCHW


# ----------------------------- reference & params ----------------------------

def _ref_forward(x, w, b, gamma, beta, *, stride=2, padding=2, isn=False):
    y = jax.lax.conv_general_dilated(
        x, w, window_strides=(stride, stride),
        padding=((padding, padding), (padding, padding)),
        dimension_numbers=('NCHW', 'OIHW', 'NCHW'))
    y = y + b[None, :, None, None]
    if isn:
        mean = jnp.mean(y, axis=(2, 3), keepdims=True)
        var = jnp.var(y, axis=(2, 3), keepdims=True)
        y = (y - mean) / jnp.sqrt(var + IN_EPS)
        y = y * gamma[None, :, None, None] + beta[None, :, None, None]
    return jnp.where(y > 0, y, NEG_SLOPE * y)


def init_params(key, in_c, out_c, ks=5):
    # Mimics nn.Conv2d default init: uniform(+/- 1/sqrt(fan_in)); IN affine: gamma=1, beta=0.
    kw_, kb_ = jax.random.split(key)
    fan_in = in_c * ks * ks
    bound = 1.0 / jnp.sqrt(fan_in)
    w = jax.random.uniform(kw_, (out_c, in_c, ks, ks), jnp.float32, -bound, bound)
    b = jax.random.uniform(kb_, (out_c,), jnp.float32, -bound, bound)
    gamma = jnp.ones((out_c,), jnp.float32)
    beta = jnp.zeros((out_c,), jnp.float32)
    return w, b, gamma, beta


if __name__ == "__main__":
    key = jax.random.PRNGKey(0)
    kx, kp = jax.random.split(key)

    N, Cin, H, W = 2, 4, 16, 16
    Cout = 8
    x = jax.random.normal(kx, (N, Cin, H, W), jnp.float32)
    w, b, gamma, beta = init_params(kp, Cin, Cout)

    # Default module config: isn=False -> Conv2d + LeakyReLU
    out = conv_in_relu(x, w, b, isn=False)
    jax.block_until_ready(out)
    ref = _ref_forward(x, w, b, gamma, beta, isn=False)
    assert out.shape == ref.shape == (N, Cout, 8, 8)
    assert jnp.allclose(out, ref, atol=5e-2, rtol=5e-2), \
        float(jnp.max(jnp.abs(out - ref)))

    # isn=True config: Conv2d + InstanceNorm2d(affine=True) + LeakyReLU
    out_in = conv_in_relu(x, w, b, gamma, beta, isn=True)
    jax.block_until_ready(out_in)
    ref_in = _ref_forward(x, w, b, gamma, beta, isn=True)
    assert jnp.allclose(out_in, ref_in, atol=5e-2, rtol=5e-2), \
        float(jnp.max(jnp.abs(out_in - ref_in)))

    print("KERNEL_OK")
</pallas_src>

<mosaic_0001>
module attributes {stable_mosaic.version = 11 : i64} {
  func.func @_conv_mm_kernel(%arg0: i32, %arg1: memref<128x128xbf16, #tpu.memory_space<vmem>>, %arg2: memref<128x128xbf16, #tpu.memory_space<vmem>>, %arg3: memref<1x128xf32, #tpu.memory_space<vmem>>, %arg4: memref<128x128xf32, #tpu.memory_space<vmem>>) attributes {dimension_semantics = [#tpu.dimension_semantics<parallel>], iteration_bounds = array<i64: 1>, scalar_prefetch = 0 : i64, scratch_operands = 0 : i64, tpu.core_type = #tpu.core_type<tc>, window_params = [{transform_indices = @transform_0, window_bounds = array<i64: 128, 128>}, {pipeline_mode = #tpu.pipeline_mode<synchronous>, transform_indices = @transform_1, window_bounds = array<i64: 128, 128>}, {pipeline_mode = #tpu.pipeline_mode<synchronous>, transform_indices = @transform_2, window_bounds = array<i64: 1, 128>}, {transform_indices = @transform_3, window_bounds = array<i64: 128, 128>}]} {
    %c0 = arith.constant 0 : index
    %c0_0 = arith.constant 0 : index
    %0 = vector.load %arg1[%c0, %c0_0] : memref<128x128xbf16, #tpu.memory_space<vmem>>, vector<128x128xbf16>
    %c0_1 = arith.constant 0 : index
    %c0_2 = arith.constant 0 : index
    %1 = vector.load %arg2[%c0_1, %c0_2] : memref<128x128xbf16, #tpu.memory_space<vmem>>, vector<128x128xbf16>
    %cst = arith.constant dense<0.000000e+00> : vector<128x128xf32>
    %2 = tpu.matmul %0, %1, %cst {dimension_numbers = #tpu.dot_dimension_numbers<[1], [0], [0], [1], [0, 0, 1, 1], [], []>} : vector<128x128xbf16>, vector<128x128xbf16>, vector<128x128xf32> -> vector<128x128xf32>
    %c0_3 = arith.constant 0 : index
    %c0_4 = arith.constant 0 : index
    %3 = vector.load %arg3[%c0_3, %c0_4] : memref<1x128xf32, #tpu.memory_space<vmem>>, vector<1x128xf32>
    %4 = vector.broadcast %3 : vector<1x128xf32> to vector<128x128xf32>
    %5 = arith.addf %2, %4 : vector<128x128xf32>
    %cst_5 = arith.constant 0.000000e+00 : f32
    %6 = vector.broadcast %cst_5 : f32 to vector<128x128xf32>
    %7 = arith.cmpf ogt, %5, %6 : vector<128x128xf32>
    %cst_6 = arith.constant 0.00999999977 : f32
    %8 = vector.broadcast %cst_6 : f32 to vector<128x128xf32>
    %9 = arith.mulf %8, %5 : vector<128x128xf32>
    %10 = arith.select %7, %5, %9 : vector<128x128xi1>, vector<128x128xf32>
    %c0_7 = arith.constant 0 : index
    %c0_8 = arith.constant 0 : index
    %11 = vector.load %arg4[%c0_7, %c0_8] : memref<128x128xf32, #tpu.memory_space<vmem>>, vector<128x128xf32>
    tpu.vector_store %arg4[%c0_7, %c0_8], %10 {strides = array<i32>} : memref<128x128xf32, #tpu.memory_space<vmem>>, vector<128x128xf32>,
    return
  }
  func.func @transform_0(%arg0: i32) -> (i32, i32) {
    %c0_i32 = arith.constant 0 : i32
    %c0_i32_0 = arith.constant 0 : i32
    return %arg0, %c0_i32 : i32, i32
  }
  func.func @transform_1(%arg0: i32) -> (i32, i32) {
    %c0_i32 = arith.constant 0 : i32
    %c0_i32_0 = arith.constant 0 : i32
    %c0_i32_1 = arith.constant 0 : i32
    return %c0_i32, %c0_i32_0 : i32, i32
  }
  func.func @transform_2(%arg0: i32) -> (i32, i32) {
    %c0_i32 = arith.constant 0 : i32
    %c0_i32_0 = arith.constant 0 : i32
    %c0_i32_1 = arith.constant 0 : i32
    return %c0_i32, %c0_i32_0 : i32, i32
  }
  func.func @transform_3(%arg0: i32) -> (i32, i32) {
    %c0_i32 = arith.constant 0 : i32
    %c0_i32_0 = arith.constant 0 : i32
    return %arg0, %c0_i32 : i32, i32
  }
}

</mosaic_0001>

<llo_original>
// kernel: tpu_custom_call.1
$region0: #{tpu_custom_call.1}
  #allocation0 [shape = 'u32[]', space=smem, size = 0x4, offset = 0x4, fixed_abs, tag = 'smem constant byte address 0x4 - core index']
  #allocation1 [shape = 'u32[72,128]{1,0:T(1,128)}', space=vmem, size = 0x9000, scoped, tag = 'internal scratch']
  %s0 = inlined_call_operand.hbm [shape: bf16[128,128], index: 0, kind: input, shape index: {}]
  %s1 = inlined_call_operand.hbm [shape: bf16[128,128], index: 1, kind: input, shape index: {}]
  %s2 = inlined_call_operand.vmem [shape: f32[1,128], index: 2, kind: input, shape index: {}]
  %s3 = inlined_call_operand.hbm [shape: f32[128,128], index: 3, kind: output, shape index: {}]
  %s4 = sld [smem:[#allocation0]]
  $region30: #{tpu_custom_call.1} parent=0
    _
  %s6 = ssub.s32 1, %s4
  %s7 = scalar_select 0, %s6, %s4
  $region1: #{tpu_custom_call.1} parent=0
    #allocation2 [shape = 'u8[32768]{0}', space=vmem, size = 0x8000, scoped, tag = 'input window, operand 0, single buffered']
    #allocation3 [shape = 's32[1]{0}', space=sflag, size = 0x4, scoped, tag = 'scoped memory for tpu_custom_call.1']
    #allocation4 [shape = 's32[1]{0}', space=sflag, size = 0x4, scoped, tag = 'scoped memory for tpu_custom_call.1']
    #allocation5 [shape = 'u8[32768]{0}', space=vmem, size = 0x8000, scoped, tag = 'input window, operand 1, single buffered']
    #allocation6 [shape = 's32[1]{0}', space=sflag, size = 0x4, scoped, tag = 'scoped memory for tpu_custom_call.1']
    #allocation7 [shape = 'u8[65536]{0}', space=vmem, size = 0x10000, scoped, tag = 'output window, operand 0, single buffered']
    %8 = vsyncpa [#allocation3], 0
    %9 = vsyncpa [#allocation6], 0
    %10 = vsyncpa [#allocation4], 0
    // Predicated region
    $region2: #{tpu_custom_call.1} parent=1 // pred_check
      _
    $region3: #{tpu_custom_call.1} parent=1 // pred_check_branch
      %12 = sbr.rel (0) target = $region5
    $region4: #{tpu_custom_call.1} parent=1 // pred_region
      %14 = vsyncadd [#allocation3], 0
      %s15 = sshll.u32 %s0, 4
      %s16 = int_to_ptr.hbm [resolvable:$true] %s15
      %s17 = sshll.u32 [#allocation2], 4
      %s18 = int_to_ptr.vmem [resolvable:$true] %s17
      %23 = dma.hbm_to_vmem [thread:$0]  %s16, 1024, %s18, [#allocation3], 64, 64, 4
    $region5: #{tpu_custom_call.1} parent=1 // pred_fallthru
      _
    // Predicated region
    $region6: #{tpu_custom_call.1} parent=1 // pred_check
      _
    $region7: #{tpu_custom_call.1} parent=1 // pred_check_branch
      %25 = sbr.rel (0) target = $region9
    $region8: #{tpu_custom_call.1} parent=1 // pred_region
      %27 = vsyncadd [#allocation6], 0
      %s28 = sshll.u32 %s1, 4
      %s29 = int_to_ptr.hbm [resolvable:$true] %s28
      %s30 = sshll.u32 [#allocation5], 4
      %s31 = int_to_ptr.vmem [resolvable:$true] %s30
      %36 = dma.hbm_to_vmem [thread:$0]  %s29, 1024, %s31, [#allocation6], 64, 64, 4
    $region9: #{tpu_custom_call.1} parent=1 // pred_fallthru
      _
    // Predicated region
    $region10: #{tpu_custom_call.1} parent=1 // pred_check
      _
    $region11: #{tpu_custom_call.1} parent=1 // pred_check_branch
      %38 = sbr.rel (0) target = $region13
    $region12: #{tpu_custom_call.1} parent=1 // pred_region
      _
    $region13: #{tpu_custom_call.1} parent=1 // pred_fallthru
      _
    // Predicated region
    $region14: #{tpu_custom_call.1} parent=1 // pred_check
      _
    $region15: #{tpu_custom_call.1} parent=1 // pred_check_branch
      %40 = sbr.rel (0) target = $region17
    $region16: #{tpu_custom_call.1} parent=1 // pred_region
      %42 = dma.done [#allocation3], 1024
    $region17: #{tpu_custom_call.1} parent=1 // pred_fallthru
      _
    // Predicated region
    $region18: #{tpu_custom_call.1} parent=1 // pred_check
      _
    $region19: #{tpu_custom_call.1} parent=1 // pred_check_branch
      %44 = sbr.rel (0) target = $region21
    $region20: #{tpu_custom_call.1} parent=1 // pred_region
      %46 = dma.done [#allocation6], 1024
    $region21: #{tpu_custom_call.1} parent=1 // pred_fallthru
      _
    %v47 = vld [vmem:[#allocation2] sm:$0xf]
    %v48 = vld [vmem:[#allocation2 + $0x4] sm:$0xf]
    %v49 = vld [vmem:[#allocation2 + $0x8] sm:$0xf]
    %v50 = vld [vmem:[#allocation2 + $0xc] sm:$0xf]
    %v51 = vld [vmem:[#allocation2 + $0x10] sm:$0xf]
    %v52 = vld [vmem:[#allocation2 + $0x14] sm:$0xf]
    %v53 = vld [vmem:[#allocation2 + $0x18] sm:$0xf]
    %v54 = vld [vmem:[#allocation2 + $0x1c] sm:$0xf]
    %v55 = vld [vmem:[#allocation2 + $0x20] sm:$0xf]
    %v56 = vld [vmem:[#allocation2 + $0x24] sm:$0xf]
    %v57 = vld [vmem:[#allocation2 + $0x28] sm:$0xf]
    %v58 = vld [vmem:[#allocation2 + $0x2c] sm:$0xf]
    %v59 = vld [vmem:[#allocation2 + $0x30] sm:$0xf]
    %v60 = vld [vmem:[#allocation2 + $0x34] sm:$0xf]
    %v61 = vld [vmem:[#allocation2 + $0x38] sm:$0xf]
    %v62 = vld [vmem:[#allocation2 + $0x3c] sm:$0xf]
    %v63 = vld [vmem:[#allocation5] sm:$0xf]
    %v64 = vld [vmem:[#allocation5 + $0x4] sm:$0xf]
    %v65 = vld [vmem:[#allocation5 + $0x8] sm:$0xf]
    %v66 = vld [vmem:[#allocation5 + $0xc] sm:$0xf]
    %v67 = vld [vmem:[#allocation5 + $0x10] sm:$0xf]
    %v68 = vld [vmem:[#allocation5 + $0x14] sm:$0xf]
    %v69 = vld [vmem:[#allocation5 + $0x18] sm:$0xf]
    %v70 = vld [vmem:[#allocation5 + $0x1c] sm:$0xf]
    %v71 = vld [vmem:[#allocation5 + $0x20] sm:$0xf]
    %v72 = vld [vmem:[#allocation5 + $0x24] sm:$0xf]
    %v73 = vld [vmem:[#allocation5 + $0x28] sm:$0xf]
    %v74 = vld [vmem:[#allocation5 + $0x2c] sm:$0xf]
    %v75 = vld [vmem:[#allocation5 + $0x30] sm:$0xf]
    %v76 = vld [vmem:[#allocation5 + $0x34] sm:$0xf]
    %v77 = vld [vmem:[#allocation5 + $0x38] sm:$0xf]
    %v78 = vld [vmem:[#allocation5 + $0x3c] sm:$0xf]
    %v79 = vld [vmem:[%s2] sm:$0x1]
    %v81 = vperm.slane %v79, 0
    %v99 = vunpack.c.l.b16 %v47
    %v100 = vunpack.c.l.b16 %v48
    %v101 = vunpack.c.l.b16 %v49
    %v102 = vunpack.c.l.b16 %v50
    %v103 = vunpack.c.l.b16 %v51
    %v104 = vunpack.c.l.b16 %v52
    %v105 = vunpack.c.l.b16 %v53
    %v106 = vunpack.c.l.b16 %v54
    %v107 = vunpack.c.l.b16 %v55
    %v108 = vunpack.c.l.b16 %v56
    %v109 = vunpack.c.l.b16 %v57
    %v110 = vunpack.c.l.b16 %v58
    %v111 = vunpack.c.l.b16 %v59
    %v112 = vunpack.c.l.b16 %v60
    %v113 = vunpack.c.l.b16 %v61
    %v114 = vunpack.c.l.b16 %v62
    %v115 = vpack.c.b16 %v100, %v99
    %v116 = vpack.c.b16 %v102, %v101
    %v117 = vpack.c.b16 %v104, %v103
    %v118 = vpack.c.b16 %v106, %v105
    %v119 = vpack.c.b16 %v108, %v107
    %v120 = vpack.c.b16 %v110, %v109
    %v121 = vpack.c.b16 %v112, %v111
    %v122 = vpack.c.b16 %v114, %v113
    %v147 = vunpack.c.l.b16 %v63
    %v148 = vunpack.c.l.b16 %v64
    %v149 = vunpack.c.l.b16 %v65
    %v150 = vunpack.c.l.b16 %v66
    %v151 = vunpack.c.l.b16 %v67
    %v152 = vunpack.c.l.b16 %v68
    %v153 = vunpack.c.l.b16 %v69
    %v154 = vunpack.c.l.b16 %v70
    %v155 = vunpack.c.l.b16 %v71
    %v156 = vunpack.c.l.b16 %v72
    %v157 = vunpack.c.l.b16 %v73
    %v158 = vunpack.c.l.b16 %v74
    %v159 = vunpack.c.l.b16 %v75
    %v160 = vunpack.c.l.b16 %v76
    %v161 = vunpack.c.l.b16 %v77
    %v162 = vunpack.c.l.b16 %v78
    %v163 = vpack.c.b16 %v148, %v147
    %v164 = vpack.c.b16 %v150, %v149
    %v165 = vpack.c.b16 %v152, %v151
    %v166 = vpack.c.b16 %v154, %v153
    %v167 = vpack.c.b16 %v156, %v155
    %v168 = vpack.c.b16 %v158, %v157
    %v169 = vpack.c.b16 %v160, %v159
    %v170 = vpack.c.b16 %v162, %v161
    %179 = vmatpush.bf16.msra.mxu0 %v170
    %180 = vmatpush.bf16.msra.mxu0 %v169
    %181 = vmatpush.bf16.msra.mxu0 %v168
    %182 = vmatpush.bf16.msra.mxu0 %v167
    %183 = vmatpush.bf16.msra.mxu0 %v166
    %184 = vmatpush.bf16.msra.mxu0 %v165
    %185 = vmatpush.bf16.msra.mxu0 %v164
    %186 = vmatpush.bf16.msra.mxu0 %v163
    %187 = vmatmul.bf16.gmra.mxu0 %v115
    %v188 = vpop.f32.mrf.mxu0
    %v189 = vadd.f32 %v81, %v188
    %v190 = vpop.f32.mrf.mxu0
    %v191 = vadd.f32 %v81, %v190
    %192 = vmatmul.bf16.gmra.mxu0 %v116
    %v193 = vpop.f32.mrf.mxu0
    %v194 = vadd.f32 %v81, %v193
    %v195 = vpop.f32.mrf.mxu0
    %v196 = vadd.f32 %v81, %v195
    %197 = vmatmul.bf16.gmra.mxu0 %v117
    %v198 = vpop.f32.mrf.mxu0
    %v199 = vadd.f32 %v81, %v198
    %v200 = vpop.f32.mrf.mxu0
    %v201 = vadd.f32 %v81, %v200
    %202 = vmatmul.bf16.gmra.mxu0 %v118
    %v203 = vpop.f32.mrf.mxu0
    %v204 = vadd.f32 %v81, %v203
    %v205 = vpop.f32.mrf.mxu0
    %v206 = vadd.f32 %v81, %v205
    %207 = vmatmul.bf16.gmra.mxu0 %v119
    %v208 = vpop.f32.mrf.mxu0
    %v209 = vadd.f32 %v81, %v208
    %v210 = vpop.f32.mrf.mxu0
    %v211 = vadd.f32 %v81, %v210
    %212 = vmatmul.bf16.gmra.mxu0 %v120
    %v213 = vpop.f32.mrf.mxu0
    %v214 = vadd.f32 %v81, %v213
    %v215 = vpop.f32.mrf.mxu0
    %v216 = vadd.f32 %v81, %v215
    %217 = vmatmul.bf16.gmra.mxu0 %v121
    %v218 = vpop.f32.mrf.mxu0
    %v219 = vadd.f32 %v81, %v218
    %v220 = vpop.f32.mrf.mxu0
    %v221 = vadd.f32 %v81, %v220
    %222 = vmatmul.bf16.gmra.mxu0 %v122
    %v223 = vpop.f32.mrf.mxu0
    %v224 = vadd.f32 %v81, %v223
    %v225 = vpop.f32.mrf.mxu0
    %v226 = vadd.f32 %v81, %v225
    %227 = vdwg.mxu0
    %vm228 = vcmp.gt.f32.partialorder %v189, 0.0
    %vm229 = vcmp.gt.f32.partialorder %v191, 0.0
    %vm230 = vcmp.gt.f32.partialorder %v194, 0.0
    %vm231 = vcmp.gt.f32.partialorder %v196, 0.0
    %vm232 = vcmp.gt.f32.partialorder %v199, 0.0
    %vm233 = vcmp.gt.f32.partialorder %v201, 0.0
    %vm234 = vcmp.gt.f32.partialorder %v204, 0.0
    %vm235 = vcmp.gt.f32.partialorder %v206, 0.0
    %vm236 = vcmp.gt.f32.partialorder %v209, 0.0
    %vm237 = vcmp.gt.f32.partialorder %v211, 0.0
    %vm238 = vcmp.gt.f32.partialorder %v214, 0.0
    %vm239 = vcmp.gt.f32.partialorder %v216, 0.0
    %vm240 = vcmp.gt.f32.partialorder %v219, 0.0
    %vm241 = vcmp.gt.f32.partialorder %v221, 0.0
    %vm242 = vcmp.gt.f32.partialorder %v224, 0.0
    %vm243 = vcmp.gt.f32.partialorder %v226, 0.0
    %v244 = vmul.f32 %v189, 0.01
    %v245 = vmul.f32 %v191, 0.01
    %v246 = vmul.f32 %v194, 0.01
    %v247 = vmul.f32 %v196, 0.01
    %v248 = vmul.f32 %v199, 0.01
    %v249 = vmul.f32 %v201, 0.01
    %v250 = vmul.f32 %v204, 0.01
    %v251 = vmul.f32 %v206, 0.01
    %v252 = vmul.f32 %v209, 0.01
    %v253 = vmul.f32 %v211, 0.01
    %v254 = vmul.f32 %v214, 0.01
    %v255 = vmul.f32 %v216, 0.01
    %v256 = vmul.f32 %v219, 0.01
    %v257 = vmul.f32 %v221, 0.01
    %v258 = vmul.f32 %v224, 0.01
    %v259 = vmul.f32 %v226, 0.01
    %v260 = vsel %vm228, %v189, %v244
    %v261 = vsel %vm229, %v191, %v245
    %v262 = vsel %vm230, %v194, %v246
    %v263 = vsel %vm231, %v196, %v247
    %v264 = vsel %vm232, %v199, %v248
    %v265 = vsel %vm233, %v201, %v249
    %v266 = vsel %vm234, %v204, %v250
    %v267 = vsel %vm235, %v206, %v251
    %v268 = vsel %vm236, %v209, %v252
    %v269 = vsel %vm237, %v211, %v253
    %v270 = vsel %vm238, %v214, %v254
    %v271 = vsel %vm239, %v216, %v255
    %v272 = vsel %vm240, %v219, %v256
    %v273 = vsel %vm241, %v221, %v257
    %v274 = vsel %vm242, %v224, %v258
    %v275 = vsel %vm243, %v226, %v259
    %276 = vst [vmem:[#allocation7] sm:$0xff] %v260
    %277 = vst [vmem:[#allocation7 + $0x8] sm:$0xff] %v261
    %278 = vst [vmem:[#allocation7 + $0x10] sm:$0xff] %v262
    %279 = vst [vmem:[#allocation7 + $0x18] sm:$0xff] %v263
    %280 = vst [vmem:[#allocation7 + $0x20] sm:$0xff] %v264
    %281 = vst [vmem:[#allocation7 + $0x28] sm:$0xff] %v265
    %282 = vst [vmem:[#allocation7 + $0x30] sm:$0xff] %v266
    %283 = vst [vmem:[#allocation7 + $0x38] sm:$0xff] %v267
    %284 = vst [vmem:[#allocation7 + $0x40] sm:$0xff] %v268
    %285 = vst [vmem:[#allocation7 + $0x48] sm:$0xff] %v269
    %286 = vst [vmem:[#allocation7 + $0x50] sm:$0xff] %v270
    %287 = vst [vmem:[#allocation7 + $0x58] sm:$0xff] %v271
    %288 = vst [vmem:[#allocation7 + $0x60] sm:$0xff] %v272
    %289 = vst [vmem:[#allocation7 + $0x68] sm:$0xff] %v273
    %290 = vst [vmem:[#allocation7 + $0x70] sm:$0xff] %v274
    %291 = vst [vmem:[#allocation7 + $0x78] sm:$0xff] %v275
    // Predicated region
    $region22: #{tpu_custom_call.1} parent=1 // pred_check
      _
    $region23: #{tpu_custom_call.1} parent=1 // pred_check_branch
      %293 = sbr.rel (0) target = $region25
    $region24: #{tpu_custom_call.1} parent=1 // pred_region
      %295 = vsyncadd [#allocation4], 0
      %s296 = sshll.u32 [#allocation7], 4
      %s297 = int_to_ptr.vmem [resolvable:$true] %s296
      %s298 = sshll.u32 %s3, 4
      %s299 = int_to_ptr.hbm [resolvable:$true] %s298
      %304 = dma.vmem_to_hbm [thread:$0]  %s297, 2048, %s299, [#allocation4], 128, 128, 8
    $region25: #{tpu_custom_call.1} parent=1 // pred_fallthru
      _
    // Predicated region
    $region26: #{tpu_custom_call.1} parent=1 // pred_check
      _
    $region27: #{tpu_custom_call.1} parent=1 // pred_check_branch
      %306 = sbr.rel (0) target = $region29
    $region28: #{tpu_custom_call.1} parent=1 // pred_region
      %308 = dma.done [#allocation4], 2048
    $region29: #{tpu_custom_call.1} parent=1 // pred_fallthru
      _
    %309 = vsyncpa [#allocation3], 1
    %310 = vsyncpa [#allocation6], 1
    %311 = vsyncpa [#allocation4], 1

</llo_original>
